<compile_context>
chip_gen: v6e
topology: v6e:2x2x1
jax: 0.10.0
libtpu: 0.0.40
codegen_flags: <defaults>
</compile_context>

<pallas_src>
import functools
from math import sqrt

import jax
import jax.numpy as jnp
from jax import lax
from jax.experimental import pallas as pl
from jax.experimental.pallas import tpu as pltpu

_LANES = 128
# Large negative *finite* mask value for padded vocab columns.  Using a finite
# value keeps the lane-wise online-softmax state NaN-free even when an entire
# lane column only ever sees padding (n_classes < 128): exp(m - m) stays
# exp(0) = 1 and the bogus partial is annihilated by exp(m - M) == 0 in the
# final cross-lane combine.
_MASK_VAL = -1e30


def _round_up(a, b):
    return -(-a // b) * b


def _tpu_vmem_and_cores():
    """Best-effort per-generation VMEM capacity and TensorCore count."""
    vmem = 64 << 20        # conservative per-core default (v7x)
    cores = 1
    try:
        info = pltpu.get_tpu_info()
        for name in ("vmem_capacity_bytes", "vmem_bytes", "vmem_size_bytes"):
            v = getattr(info, name, None)
            if v:
                vmem = int(v)
                break
        for name in ("num_cores", "num_tensorcores", "tensorcores_per_chip",
                     "cores_per_chip"):
            v = getattr(info, name, None)
            if v:
                cores = int(v)
                break
    except Exception:
        pass
    return vmem, cores


def _tile_footprint_bytes(tm, tn, tk, in_bytes, split_k):
    # Double-buffered x/W tiles + optional K accumulator + ~3 (tm, tn) f32
    # compiler temporaries for the epilogue + lane-dense state + tiny blocks,
    # with 15% slack.
    return int(1.15 * (
        2 * (tm + tn) * tk * in_bytes
        + (tm * tn * 4 if split_k else 0)
        + 3 * tm * tn * 4
        + 3 * tm * _LANES * 4
        + 8 * tm * 4
        + (1 << 20)))


def _select_tiles(n_tokens, n_classes, dim, in_bytes, vmem_cap, num_cores,
                  tm, tn, tk):
    budget = int(vmem_cap * 0.85)
    big_vmem = vmem_cap >= (100 << 20)          # v5e/v6e: 128 MiB, v7x: 64 MiB

    if tm is None:
        # Compute/HBM crossover on the token tile (review): ~650-700 on v6e,
        # ~310 on v7x, ~240 on v5e -> 1024 rows for bf16 on 128 MiB chips,
        # 512 otherwise.
        tm = 1024 if (big_vmem and in_bytes <= 2) else 512
    if tn is None:
        tn = 1024 if big_vmem else 512

    tm = min(_round_up(tm, 8), _round_up(n_tokens, 8))
    tn = min(_round_up(tn, _LANES), _round_up(n_classes, _LANES))

    # Keep at least `num_cores` token tiles so the "parallel" token axis can
    # shard across TensorCores (v7x has 2 TCs per chip).
    if num_cores > 1 and n_tokens > 8 * num_cores:
        tm = min(tm, _round_up(-(-n_tokens // num_cores), 8))

    if tk is not None:
        tk = max(_LANES, min(int(tk), dim))
        if tk < dim:
            tk = _round_up(tk, _LANES)
        split_k = tk < dim
        if not split_k:
            tk = dim
    else:
        tk, split_k = dim, False
        if _tile_footprint_bytes(tm, tn, tk, in_bytes, False) > budget:
            # Split the contraction (dim) axis so compute-bound tm/tn stay
            # inside VMEM (needed on v7x at dim >= ~8-16k).
            split_k = True
            tk = min(_round_up(dim, _LANES), 4096)
            while (_tile_footprint_bytes(tm, tn, tk, in_bytes, True) > budget
                   and tk > 512):
                tk = max(_LANES, _round_up(tk // 2, _LANES))
            while (_tile_footprint_bytes(tm, tn, tk, in_bytes, True) > budget
                   and tn > 2 * _LANES):
                tn = max(_LANES, _round_up(tn // 2, _LANES))
            while (_tile_footprint_bytes(tm, tn, tk, in_bytes, True) > budget
                   and tm > 64):
                tm = max(8, _round_up(tm // 2, 8))
    return tm, tn, tk, split_k


def _fused_proj_ce_kernel(x_ref, w_ref, targ_ref, loss_ref,
                          m_sc, l_sc, tgt_sc, *acc_scratch,
                          ignore_index, mask_classes, n_classes, split_k):
    j = pl.program_id(1)
    k = pl.program_id(2)
    nj = pl.num_programs(1)
    nk = pl.num_programs(2)
    tn = w_ref.shape[0]
    n_chunks = tn // _LANES

    # Reset the lane-dense online-softmax state once per token tile.
    @pl.when(jnp.logical_and(j == 0, k == 0))
    def _():
        m_sc[...] = jnp.full_like(m_sc, _MASK_VAL)
        l_sc[...] = jnp.zeros_like(l_sc)
        tgt_sc[...] = jnp.zeros_like(tgt_sc)

    # Projection chunk on the MXU: (tm, tk) x (tn, tk)^T -> (tm, tn).  Both
    # operands contract their last dim (MXU-native, no W transpose) and stay
    # in their native dtype (bf16 stays bf16); accumulation is f32.
    partial_logits = lax.dot_general(
        x_ref[...], w_ref[...],
        dimension_numbers=(((1,), (1,)), ((), ())),
        preferred_element_type=jnp.float32,
    )

    def online_update(logits):
        base = j * tn
        if mask_classes:
            # Only emitted when the vocab was padded in the wrapper.
            cols = base + lax.broadcasted_iota(jnp.int32, (1, tn), 1)
            logits = jnp.where(cols < n_classes, logits, _MASK_VAL)

        local_targ = targ_ref[...] - base                       # (tm, 1) int32
        lane = lax.broadcasted_iota(jnp.int32, (1, _LANES), 1)  # (1, 128)

        # Lane-wise (tm, 128) online softmax: per-step reductions are
        # element-wise over the tn/128 lane chunks (VALU only); the single
        # cross-lane XLU reduce happens once per token tile in the epilogue.
        col_max = logits[:, 0:_LANES]
        for c in range(1, n_chunks):
            col_max = jnp.maximum(col_max,
                                  logits[:, c * _LANES:(c + 1) * _LANES])
        m_prev = m_sc[...]
        m_new = jnp.maximum(m_prev, col_max)
        s = jnp.exp(m_prev - m_new) * l_sc[...]
        t = tgt_sc[...]
        for c in range(n_chunks):
            chunk = logits[:, c * _LANES:(c + 1) * _LANES]
            s = s + jnp.exp(chunk - m_new)
            t = t + jnp.where(lane + c * _LANES == local_targ, chunk, 0.0)
        m_sc[...] = m_new
        l_sc[...] = s
        tgt_sc[...] = t

    if split_k:
        acc_ref = acc_scratch[0]

        @pl.when(k == 0)
        def _():
            acc_ref[...] = jnp.zeros_like(acc_ref)

        @pl.when(k < nk - 1)
        def _():
            acc_ref[...] = acc_ref[...] + partial_logits

        @pl.when(k == nk - 1)
        def _():
            online_update(acc_ref[...] + partial_logits)
    else:
        online_update(partial_logits)

    # Epilogue: combine the 128 lane partials once and emit per-token losses.
    @pl.when(jnp.logical_and(j == nj - 1, k == nk - 1))
    def _():
        m_row = jnp.max(m_sc[...], axis=-1, keepdims=True)           # (tm, 1)
        l_row = jnp.sum(l_sc[...] * jnp.exp(m_sc[...] - m_row),
                        axis=-1, keepdims=True)
        t_row = jnp.sum(tgt_sc[...], axis=-1, keepdims=True)
        loss = m_row + jnp.log(l_row) - t_row
        loss = jnp.where(targ_ref[...] == ignore_index, 0.0, loss)
        loss_ref[...] = loss.astype(loss_ref.dtype)


def fused_projection_cross_entropy_loss(x, proj_weight, targ, *,
                                        ignore_index=-100, reduction="mean",
                                        tm=None, tn=None, tk=None):
    assert x.ndim == 2 and proj_weight.ndim == 2 and targ.ndim == 1
    n_tokens, dim = x.shape
    n_classes, dim_w = proj_weight.shape
    assert dim == dim_w
    assert targ.shape[0] == n_tokens
    assert reduction in ("mean", "sum")

    in_bytes = jnp.dtype(x.dtype).itemsize
    vmem_cap, num_cores = _tpu_vmem_and_cores()
    tm, tn, tk, split_k = _select_tiles(n_tokens, n_classes, dim, in_bytes,
                                        vmem_cap, num_cores, tm, tn, tk)

    n_tokens_p = _round_up(n_tokens, tm)
    n_classes_p = _round_up(n_classes, tn)
    dim_p = _round_up(dim, tk) if split_k else dim
    nk = dim_p // tk if split_k else 1

    pad_tok = n_tokens_p - n_tokens
    pad_cls = n_classes_p - n_classes
    pad_dim = dim_p - dim
    mask_classes = pad_cls > 0

    targ_i32 = targ.astype(jnp.int32)
    w = proj_weight
    if pad_tok or pad_dim:
        x = jnp.pad(x, ((0, pad_tok), (0, pad_dim)))
    if pad_tok:
        targ_i32 = jnp.pad(targ_i32, (0, pad_tok),
                           constant_values=ignore_index)
    if pad_cls or pad_dim:
        w = jnp.pad(w, ((0, pad_cls), (0, pad_dim)))

    targ2d = targ_i32.reshape(n_tokens_p, 1)
    grid = (n_tokens_p // tm, n_classes_p // tn, nk)

    scratch = [pltpu.VMEM((tm, _LANES), jnp.float32),   # lane-wise running max
               pltpu.VMEM((tm, _LANES), jnp.float32),   # lane-wise sum-exp
               pltpu.VMEM((tm, _LANES), jnp.float32)]   # lane-wise target logit
    if split_k:
        scratch.append(pltpu.VMEM((tm, tn), jnp.float32))  # K-split logits acc

    vmem_needed = _tile_footprint_bytes(tm, tn, tk, in_bytes, split_k)
    vmem_limit = int(min(max(vmem_needed, 32 << 20), vmem_cap))

    loss_per_token = pl.pallas_call(
        functools.partial(_fused_proj_ce_kernel,
                          ignore_index=ignore_index,
                          mask_classes=mask_classes,
                          n_classes=n_classes,
                          split_k=split_k),
        out_shape=jax.ShapeDtypeStruct((n_tokens_p, 1), jnp.float32),
        grid_spec=pltpu.PrefetchScalarGridSpec(
            num_scalar_prefetch=0,
            grid=grid,
            in_specs=[
                pl.BlockSpec((tm, tk), lambda i, j, k: (i, k)),   # x tile
                pl.BlockSpec((tn, tk), lambda i, j, k: (j, k)),   # W tile
                pl.BlockSpec((tm, 1), lambda i, j, k: (i, 0)),    # targets
            ],
            out_specs=pl.BlockSpec((tm, 1), lambda i, j, k: (i, 0)),
            scratch_shapes=scratch,
        ),
        compiler_params=pltpu.CompilerParams(
            dimension_semantics=("parallel", "arbitrary", "arbitrary"),
            vmem_limit_bytes=vmem_limit),
    )(x, w, targ2d)

    # Final reduction + normalization on the f32 scalar (glue).
    total = jnp.sum(loss_per_token)
    if reduction == "mean":
        divisor = jnp.sum(targ != ignore_index).astype(jnp.float32)
        # If every target is ignored, all per-token losses are 0; avoid 0/0.
        total = total / jnp.maximum(divisor, 1.0)
    return total.astype(x.dtype)


def _reference(x, proj_weight, targ, ignore_index, reduction):
    logits = x.astype(jnp.float32) @ proj_weight.astype(jnp.float32).T
    lse = jax.scipy.special.logsumexp(logits, axis=-1)
    safe_t = jnp.clip(targ, 0, logits.shape[1] - 1)
    tgt_logit = jnp.take_along_axis(logits, safe_t[:, None], axis=-1)[:, 0]
    loss_i = jnp.where(targ == ignore_index, 0.0, lse - tgt_logit)
    total = jnp.sum(loss_i)
    if reduction == "mean":
        divisor = jnp.sum(targ != ignore_index).astype(jnp.float32)
        total = total / jnp.maximum(divisor, 1.0)
    return total.astype(x.dtype)


if __name__ == "__main__":
    ignore_index = -100
    key = jax.random.PRNGKey(0)

    cases = [
        # (n_tokens, dim, n_classes, reduction, tk_override)
        (8, 32, 256, "mean", None),    # single tile everything, nk=1
        (10, 64, 200, "sum", None),    # ragged tokens + ragged vocab (class mask)
        (24, 48, 100, "mean", None),   # vocab < 128: all-padding lanes exercised
        (32, 256, 384, "mean", 128),   # K-split path (nk=2) + multi-chunk tiles
    ]

    ok = True
    for (n_tokens, dim, n_classes, reduction, tk) in cases:
        key, kx, kw, kt = jax.random.split(key, 4)
        x = jax.random.normal(kx, (n_tokens, dim), dtype=jnp.float32)
        # kaiming_uniform_(a=sqrt(5)) on (n_classes, dim) -> U(-1/sqrt(dim), 1/sqrt(dim))
        bound = 1.0 / sqrt(dim)
        proj_weight = jax.random.uniform(
            kw, (n_classes, dim), dtype=jnp.float32, minval=-bound, maxval=bound)
        targ = jax.random.randint(kt, (n_tokens,), 0, n_classes, dtype=jnp.int32)
        targ = targ.at[3].set(ignore_index)   # exercise the ignore_index path

        loss = fused_projection_cross_entropy_loss(
            x, proj_weight, targ, ignore_index=ignore_index,
            reduction=reduction, tk=tk)
        loss = jax.block_until_ready(loss)

        ref = _reference(x, proj_weight, targ, ignore_index, reduction)
        if not jnp.allclose(loss, ref, rtol=2e-3, atol=2e-3):
            ok = False
            print("MISMATCH", (n_tokens, dim, n_classes, reduction, tk),
                  loss, ref)

    assert ok
    print("KERNEL_OK")
</pallas_src>

<mosaic_0001>
module attributes {stable_mosaic.version = 11 : i64} {
  func.func @_fused_proj_ce_kernel(%arg0: i32, %arg1: i32, %arg2: i32, %arg3: memref<8x32xf32, #tpu.memory_space<vmem>>, %arg4: memref<256x32xf32, #tpu.memory_space<vmem>>, %arg5: memref<8x1xi32, #tpu.memory_space<vmem>>, %arg6: memref<8x1xf32, #tpu.memory_space<vmem>>, %arg7: memref<8x128xf32, #tpu.memory_space<vmem>>, %arg8: memref<8x128xf32, #tpu.memory_space<vmem>>, %arg9: memref<8x128xf32, #tpu.memory_space<vmem>>) attributes {dimension_semantics = [#tpu.dimension_semantics<parallel>, #tpu.dimension_semantics<arbitrary>, #tpu.dimension_semantics<arbitrary>], iteration_bounds = array<i64: 1, 1, 1>, scalar_prefetch = 0 : i64, scratch_operands = 3 : i64, tpu.core_type = #tpu.core_type<tc>, window_params = [{transform_indices = @transform_0, window_bounds = array<i64: 8, 32>}, {transform_indices = @transform_1, window_bounds = array<i64: 256, 32>}, {transform_indices = @transform_2, window_bounds = array<i64: 8, 1>}, {transform_indices = @transform_3, window_bounds = array<i64: 8, 1>}]} {
    %c0_i32 = arith.constant 0 : i32
    %0 = arith.cmpi eq, %arg1, %c0_i32 : i32
    %c0_i32_0 = arith.constant 0 : i32
    %1 = arith.cmpi eq, %arg2, %c0_i32_0 : i32
    %2 = arith.andi %0, %1 : i1
    %3 = arith.extui %2 : i1 to i32
    %c0_i32_1 = arith.constant 0 : i32
    %4 = arith.cmpi ne, %3, %c0_i32_1 : i32
    scf.if %4 {
      %cst_25 = arith.constant -1.000000e+30 : f32
      %55 = vector.broadcast %cst_25 : f32 to vector<8x128xf32>
      %c0_26 = arith.constant 0 : index
      %c0_27 = arith.constant 0 : index
      %56 = vector.load %arg7[%c0_26, %c0_27] : memref<8x128xf32, #tpu.memory_space<vmem>>, vector<8x128xf32>
      tpu.vector_store %arg7[%c0_26, %c0_27], %55 {strides = array<i32>} : memref<8x128xf32, #tpu.memory_space<vmem>>, vector<8x128xf32>,
      %cst_28 = arith.constant 0.000000e+00 : f32
      %57 = vector.broadcast %cst_28 : f32 to vector<8x128xf32>
      %c0_29 = arith.constant 0 : index
      %c0_30 = arith.constant 0 : index
      %58 = vector.load %arg8[%c0_29, %c0_30] : memref<8x128xf32, #tpu.memory_space<vmem>>, vector<8x128xf32>
      tpu.vector_store %arg8[%c0_29, %c0_30], %57 {strides = array<i32>} : memref<8x128xf32, #tpu.memory_space<vmem>>, vector<8x128xf32>,
      %cst_31 = arith.constant 0.000000e+00 : f32
      %59 = vector.broadcast %cst_31 : f32 to vector<8x128xf32>
      %c0_32 = arith.constant 0 : index
      %c0_33 = arith.constant 0 : index
      %60 = vector.load %arg9[%c0_32, %c0_33] : memref<8x128xf32, #tpu.memory_space<vmem>>, vector<8x128xf32>
      tpu.vector_store %arg9[%c0_32, %c0_33], %59 {strides = array<i32>} : memref<8x128xf32, #tpu.memory_space<vmem>>, vector<8x128xf32>,
    } else {
    }
    %c0 = arith.constant 0 : index
    %c0_2 = arith.constant 0 : index
    %5 = vector.load %arg3[%c0, %c0_2] : memref<8x32xf32, #tpu.memory_space<vmem>>, vector<8x32xf32>
    %c0_3 = arith.constant 0 : index
    %c0_4 = arith.constant 0 : index
    %6 = vector.load %arg4[%c0_3, %c0_4] : memref<256x32xf32, #tpu.memory_space<vmem>>, vector<256x32xf32>
    %cst = arith.constant dense<0.000000e+00> : vector<8x256xf32>
    %7 = tpu.matmul %5, %6, %cst {dimension_numbers = #tpu.dot_dimension_numbers<[1], [1], [0], [0], [0, 0, 1, 0], [], []>} : vector<8x32xf32>, vector<256x32xf32>, vector<8x256xf32> -> vector<8x256xf32>
    %c256_i32 = arith.constant 256 : i32
    %8 = arith.muli %arg1, %c256_i32 : i32
    %c0_5 = arith.constant 0 : index
    %c0_6 = arith.constant 0 : index
    %9 = vector.load %arg5[%c0_5, %c0_6] : memref<8x1xi32, #tpu.memory_space<vmem>>, vector<8x1xi32>
    %10 = vector.broadcast %8 : i32 to vector<8x1xi32>
    %11 = arith.subi %9, %10 : vector<8x1xi32>
    %12 = tpu.iota {dimensions = array<i32: 1>} : vector<1x128xi32>
    %13 = vector.extract_strided_slice %7 {offsets = [0, 0], sizes = [8, 128], strides = [1, 1]} : vector<8x256xf32> to vector<8x128xf32>
    %14 = vector.extract_strided_slice %7 {offsets = [0, 128], sizes = [8, 128], strides = [1, 1]} : vector<8x256xf32> to vector<8x128xf32>
    %15 = arith.maximumf %13, %14 : vector<8x128xf32>
    %c0_7 = arith.constant 0 : index
    %c0_8 = arith.constant 0 : index
    %16 = vector.load %arg7[%c0_7, %c0_8] : memref<8x128xf32, #tpu.memory_space<vmem>>, vector<8x128xf32>
    %17 = arith.maximumf %16, %15 : vector<8x128xf32>
    %18 = arith.subf %16, %17 : vector<8x128xf32>
    %19 = math.exp %18 : vector<8x128xf32>
    %c0_9 = arith.constant 0 : index
    %c0_10 = arith.constant 0 : index
    %20 = vector.load %arg8[%c0_9, %c0_10] : memref<8x128xf32, #tpu.memory_space<vmem>>, vector<8x128xf32>
    %21 = arith.mulf %19, %20 : vector<8x128xf32>
    %c0_11 = arith.constant 0 : index
    %c0_12 = arith.constant 0 : index
    %22 = vector.load %arg9[%c0_11, %c0_12] : memref<8x128xf32, #tpu.memory_space<vmem>>, vector<8x128xf32>
    %23 = vector.extract_strided_slice %7 {offsets = [0, 0], sizes = [8, 128], strides = [1, 1]} : vector<8x256xf32> to vector<8x128xf32>
    %24 = arith.subf %23, %17 : vector<8x128xf32>
    %25 = math.exp %24 : vector<8x128xf32>
    %26 = arith.addf %21, %25 : vector<8x128xf32>
    %c0_i32_13 = arith.constant 0 : i32
    %27 = vector.broadcast %c0_i32_13 : i32 to vector<1x128xi32>
    %28 = arith.addi %12, %27 : vector<1x128xi32>
    %29 = vector.broadcast %28 : vector<1x128xi32> to vector<8x128xi32>
    %30 = vector.broadcast %11 : vector<8x1xi32> to vector<8x128xi32>
    %31 = arith.cmpi eq, %29, %30 : vector<8x128xi32>
    %cst_14 = arith.constant 0.000000e+00 : f32
    %32 = vector.broadcast %cst_14 : f32 to vector<8x128xf32>
    %33 = arith.select %31, %23, %32 : vector<8x128xi1>, vector<8x128xf32>
    %34 = arith.addf %22, %33 : vector<8x128xf32>
    %35 = vector.extract_strided_slice %7 {offsets = [0, 128], sizes = [8, 128], strides = [1, 1]} : vector<8x256xf32> to vector<8x128xf32>
    %36 = arith.subf %35, %17 : vector<8x128xf32>
    %37 = math.exp %36 : vector<8x128xf32>
    %38 = arith.addf %26, %37 : vector<8x128xf32>
    %c128_i32 = arith.constant 128 : i32
    %39 = vector.broadcast %c128_i32 : i32 to vector<1x128xi32>
    %40 = arith.addi %12, %39 : vector<1x128xi32>
    %41 = vector.broadcast %40 : vector<1x128xi32> to vector<8x128xi32>
    %42 = vector.broadcast %11 : vector<8x1xi32> to vector<8x128xi32>
    %43 = arith.cmpi eq, %41, %42 : vector<8x128xi32>
    %cst_15 = arith.constant 0.000000e+00 : f32
    %44 = vector.broadcast %cst_15 : f32 to vector<8x128xf32>
    %45 = arith.select %43, %35, %44 : vector<8x128xi1>, vector<8x128xf32>
    %46 = arith.addf %34, %45 : vector<8x128xf32>
    %c0_16 = arith.constant 0 : index
    %c0_17 = arith.constant 0 : index
    %47 = vector.load %arg7[%c0_16, %c0_17] : memref<8x128xf32, #tpu.memory_space<vmem>>, vector<8x128xf32>
    tpu.vector_store %arg7[%c0_16, %c0_17], %17 {strides = array<i32>} : memref<8x128xf32, #tpu.memory_space<vmem>>, vector<8x128xf32>,
    %c0_18 = arith.constant 0 : index
    %c0_19 = arith.constant 0 : index
    %48 = vector.load %arg8[%c0_18, %c0_19] : memref<8x128xf32, #tpu.memory_space<vmem>>, vector<8x128xf32>
    tpu.vector_store %arg8[%c0_18, %c0_19], %38 {strides = array<i32>} : memref<8x128xf32, #tpu.memory_space<vmem>>, vector<8x128xf32>,
    %c0_20 = arith.constant 0 : index
    %c0_21 = arith.constant 0 : index
    %49 = vector.load %arg9[%c0_20, %c0_21] : memref<8x128xf32, #tpu.memory_space<vmem>>, vector<8x128xf32>
    tpu.vector_store %arg9[%c0_20, %c0_21], %46 {strides = array<i32>} : memref<8x128xf32, #tpu.memory_space<vmem>>, vector<8x128xf32>,
    %c0_i32_22 = arith.constant 0 : i32
    %50 = arith.cmpi eq, %arg1, %c0_i32_22 : i32
    %c0_i32_23 = arith.constant 0 : i32
    %51 = arith.cmpi eq, %arg2, %c0_i32_23 : i32
    %52 = arith.andi %50, %51 : i1
    %53 = arith.extui %52 : i1 to i32
    %c0_i32_24 = arith.constant 0 : i32
    %54 = arith.cmpi ne, %53, %c0_i32_24 : i32
    scf.if %54 {
      %c0_25 = arith.constant 0 : index
      %c0_26 = arith.constant 0 : index
      %55 = vector.load %arg7[%c0_25, %c0_26] : memref<8x128xf32, #tpu.memory_space<vmem>>, vector<8x128xf32>
      %cst_27 = arith.constant dense<0xFF800000> : vector<8xf32>
      %56 = vector.multi_reduction <maximumf>, %55, %cst_27 [1] : vector<8x128xf32> to vector<8xf32>
      %57 = vector.shape_cast %56 : vector<8xf32> to vector<8x1xf32>
      %c0_28 = arith.constant 0 : index
      %c0_29 = arith.constant 0 : index
      %58 = vector.load %arg8[%c0_28, %c0_29] : memref<8x128xf32, #tpu.memory_space<vmem>>, vector<8x128xf32>
      %c0_30 = arith.constant 0 : index
      %c0_31 = arith.constant 0 : index
      %59 = vector.load %arg7[%c0_30, %c0_31] : memref<8x128xf32, #tpu.memory_space<vmem>>, vector<8x128xf32>
      %60 = vector.broadcast %57 : vector<8x1xf32> to vector<8x128xf32>
      %61 = arith.subf %59, %60 : vector<8x128xf32>
      %62 = math.exp %61 : vector<8x128xf32>
      %63 = arith.mulf %58, %62 : vector<8x128xf32>
      %cst_32 = arith.constant dense<0.000000e+00> : vector<8xf32>
      %64 = vector.multi_reduction <add>, %63, %cst_32 [1] : vector<8x128xf32> to vector<8xf32>
      %65 = vector.shape_cast %64 : vector<8xf32> to vector<8x1xf32>
      %c0_33 = arith.constant 0 : index
      %c0_34 = arith.constant 0 : index
      %66 = vector.load %arg9[%c0_33, %c0_34] : memref<8x128xf32, #tpu.memory_space<vmem>>, vector<8x128xf32>
      %cst_35 = arith.constant dense<0.000000e+00> : vector<8xf32>
      %67 = vector.multi_reduction <add>, %66, %cst_35 [1] : vector<8x128xf32> to vector<8xf32>
      %68 = vector.shape_cast %67 : vector<8xf32> to vector<8x1xf32>
      %69 = math.log %65 : vector<8x1xf32>
      %70 = arith.addf %57, %69 : vector<8x1xf32>
      %71 = arith.subf %70, %68 : vector<8x1xf32>
      %c0_36 = arith.constant 0 : index
      %c0_37 = arith.constant 0 : index
      %72 = vector.load %arg5[%c0_36, %c0_37] : memref<8x1xi32, #tpu.memory_space<vmem>>, vector<8x1xi32>
      %c-100_i32 = arith.constant -100 : i32
      %73 = vector.broadcast %c-100_i32 : i32 to vector<8x1xi32>
      %74 = arith.cmpi eq, %72, %73 : vector<8x1xi32>
      %cst_38 = arith.constant 0.000000e+00 : f32
      %75 = vector.broadcast %cst_38 : f32 to vector<8x1xf32>
      %76 = arith.select %74, %75, %71 : vector<8x1xi1>, vector<8x1xf32>
      %c0_39 = arith.constant 0 : index
      %c0_40 = arith.constant 0 : index
      %77 = vector.load %arg6[%c0_39, %c0_40] : memref<8x1xf32, #tpu.memory_space<vmem>>, vector<8x1xf32>
      tpu.vector_store %arg6[%c0_39, %c0_40], %76 {strides = array<i32>} : memref<8x1xf32, #tpu.memory_space<vmem>>, vector<8x1xf32>,
    } else {
    }
    return
  }
  func.func @transform_0(%arg0: i32, %arg1: i32, %arg2: i32) -> (i32, i32) {
    %c0_i32 = arith.constant 0 : i32
    return %arg0, %arg2 : i32, i32
  }
  func.func @transform_1(%arg0: i32, %arg1: i32, %arg2: i32) -> (i32, i32) {
    %c0_i32 = arith.constant 0 : i32
    return %arg1, %arg2 : i32, i32
  }
  func.func @transform_2(%arg0: i32, %arg1: i32, %arg2: i32) -> (i32, i32) {
    %c0_i32 = arith.constant 0 : i32
    %c0_i32_0 = arith.constant 0 : i32
    return %arg0, %c0_i32 : i32, i32
  }
  func.func @transform_3(%arg0: i32, %arg1: i32, %arg2: i32) -> (i32, i32) {
    %c0_i32 = arith.constant 0 : i32
    %c0_i32_0 = arith.constant 0 : i32
    return %arg0, %c0_i32 : i32, i32
  }
}

</mosaic_0001>

<llo_original>
// kernel: tpu_custom_call.1
$region0: #{tpu_custom_call.1}
  #allocation0 [shape = 'u32[]', space=smem, size = 0x4, offset = 0x4, fixed_abs, tag = 'smem constant byte address 0x4 - core index']
  #allocation1 [shape = 'u32[144,128]{1,0:T(1,128)}', space=vmem, size = 0x12000, scoped, tag = 'internal scratch']
  #allocation2 [shape = 'f32[8,128]{1,0:T(8,128)}', space=vmem, size = 0x1000, scoped, tag = 'scratch operand']
  #allocation3 [shape = 'f32[8,128]{1,0:T(8,128)}', space=vmem, size = 0x1000, scoped, tag = 'scratch operand']
  #allocation4 [shape = 'f32[8,128]{1,0:T(8,128)}', space=vmem, size = 0x1000, scoped, tag = 'scratch operand']
  %s0 = inlined_call_operand.vmem [shape: f32[8,32], index: 0, kind: input, shape index: {}]
  %s1 = inlined_call_operand.vmem [shape: f32[256,32], index: 1, kind: input, shape index: {}]
  %s2 = inlined_call_operand.vmem [shape: s32[8,1], index: 2, kind: input, shape index: {}]
  %s3 = inlined_call_operand.vmem [shape: f32[8,1], index: 3, kind: output, shape index: {}]
  %s4 = sld [smem:[#allocation0]]
  $region30: #{tpu_custom_call.1} parent=0
    _
  %s6 = ssub.s32 1, %s4
  %s7 = scalar_select 0, %s6, %s4
  // Predicated region
  $region2: #{tpu_custom_call.1} parent=0 // pred_check
    _
  $region3: #{tpu_custom_call.1} parent=0 // pred_check_branch
    %9 = sbr.rel (0) target = $region5
  $region4: #{tpu_custom_call.1} parent=0 // pred_region
    _
  $region5: #{tpu_custom_call.1} parent=0 // pred_fallthru
    _
  // Predicated region
  $region6: #{tpu_custom_call.1} parent=0 // pred_check
    _
  $region7: #{tpu_custom_call.1} parent=0 // pred_check_branch
    %11 = sbr.rel (0) target = $region9
  $region8: #{tpu_custom_call.1} parent=0 // pred_region
    _
  $region9: #{tpu_custom_call.1} parent=0 // pred_fallthru
    _
  // Predicated region
  $region10: #{tpu_custom_call.1} parent=0 // pred_check
    _
  $region11: #{tpu_custom_call.1} parent=0 // pred_check_branch
    %13 = sbr.rel (0) target = $region13
  $region12: #{tpu_custom_call.1} parent=0 // pred_region
    _
  $region13: #{tpu_custom_call.1} parent=0 // pred_fallthru
    _
  %p14 = scmp.eq.s32.totalorder 0, 0
  %p15 = scmp.eq.s32.totalorder 0, 0
  %p16 = pnand %p14, %p15
  %p17 = pneg %p16
  // Predicated region
  $region14: #{tpu_custom_call.1} parent=0 // pred_check
    _
  $region15: #{tpu_custom_call.1} parent=0 // pred_check_branch
    %19 = sbr.rel (%p16) target = $region17
  $region16: #{tpu_custom_call.1} parent=0 // pred_region
    %20 = vst [vmem:[#allocation2] sm:$0xff] -1e+30
    %21 = vst [vmem:[#allocation3] sm:$0xff] 0.0
    %22 = vst [vmem:[#allocation4] sm:$0xff] 0.0
  $region17: #{tpu_custom_call.1} parent=0 // pred_fallthru
    _
  %v23 = vld [vmem:[%s0] sm:$0xff]
  %v24 = vld [vmem:[%s1] sm:$0xff]
  %v25 = vld [vmem:[%s1 + $0x8] sm:$0xff]
  %v26 = vld [vmem:[%s1 + $0x10] sm:$0xff]
  %v27 = vld [vmem:[%s1 + $0x18] sm:$0xff]
  %v28 = vld [vmem:[%s1 + $0x20] sm:$0xff]
  %v29 = vld [vmem:[%s1 + $0x28] sm:$0xff]
  %v30 = vld [vmem:[%s1 + $0x30] sm:$0xff]
  %v31 = vld [vmem:[%s1 + $0x38] sm:$0xff]
  %v32 = vld [vmem:[%s1 + $0x40] sm:$0xff]
  %v33 = vld [vmem:[%s1 + $0x48] sm:$0xff]
  %v34 = vld [vmem:[%s1 + $0x50] sm:$0xff]
  %v35 = vld [vmem:[%s1 + $0x58] sm:$0xff]
  %v36 = vld [vmem:[%s1 + $0x60] sm:$0xff]
  %v37 = vld [vmem:[%s1 + $0x68] sm:$0xff]
  %v38 = vld [vmem:[%s1 + $0x70] sm:$0xff]
  %v39 = vld [vmem:[%s1 + $0x78] sm:$0xff]
  %v40 = vld [vmem:[%s1 + $0x80] sm:$0xff]
  %v41 = vld [vmem:[%s1 + $0x88] sm:$0xff]
  %v42 = vld [vmem:[%s1 + $0x90] sm:$0xff]
  %v43 = vld [vmem:[%s1 + $0x98] sm:$0xff]
  %v44 = vld [vmem:[%s1 + $0xa0] sm:$0xff]
  %v45 = vld [vmem:[%s1 + $0xa8] sm:$0xff]
  %v46 = vld [vmem:[%s1 + $0xb0] sm:$0xff]
  %v47 = vld [vmem:[%s1 + $0xb8] sm:$0xff]
  %v48 = vld [vmem:[%s1 + $0xc0] sm:$0xff]
  %v49 = vld [vmem:[%s1 + $0xc8] sm:$0xff]
  %v50 = vld [vmem:[%s1 + $0xd0] sm:$0xff]
  %v51 = vld [vmem:[%s1 + $0xd8] sm:$0xff]
  %v52 = vld [vmem:[%s1 + $0xe0] sm:$0xff]
  %v53 = vld [vmem:[%s1 + $0xe8] sm:$0xff]
  %v54 = vld [vmem:[%s1 + $0xf0] sm:$0xff]
  %v55 = vld [vmem:[%s1 + $0xf8] sm:$0xff]
  %vm56 = vcmask 261120
  %v58 = vsel %vm56, %v23, 0
  %v61 = vsel %vm56, %v24, 0
  %v64 = vsel %vm56, %v25, 0
  %v67 = vsel %vm56, %v26, 0
  %v70 = vsel %vm56, %v27, 0
  %v73 = vsel %vm56, %v28, 0
  %v76 = vsel %vm56, %v29, 0
  %v79 = vsel %vm56, %v30, 0
  %v82 = vsel %vm56, %v31, 0
  %v85 = vsel %vm56, %v32, 0
  %v88 = vsel %vm56, %v33, 0
  %v91 = vsel %vm56, %v34, 0
  %v94 = vsel %vm56, %v35, 0
  %v97 = vsel %vm56, %v36, 0
  %v100 = vsel %vm56, %v37, 0
  %v103 = vsel %vm56, %v38, 0
  %v106 = vsel %vm56, %v39, 0
  %v109 = vsel %vm56, %v40, 0
  %v112 = vsel %vm56, %v41, 0
  %v115 = vsel %vm56, %v42, 0
  %v118 = vsel %vm56, %v43, 0
  %v121 = vsel %vm56, %v44, 0
  %v124 = vsel %vm56, %v45, 0
  %v127 = vsel %vm56, %v46, 0
  %v130 = vsel %vm56, %v47, 0
  %v133 = vsel %vm56, %v48, 0
  %v136 = vsel %vm56, %v49, 0
  %v139 = vsel %vm56, %v50, 0
  %v142 = vsel %vm56, %v51, 0
  %v145 = vsel %vm56, %v52, 0
  %v148 = vsel %vm56, %v53, 0
  %v151 = vsel %vm56, %v54, 0
  %v154 = vsel %vm56, %v55, 0
  %156 = vmatprep.subr.mxu0 0.0
  %157 = vmatpush1.xpose.msra.mxu0 %v106
  %158 = vmatprep.subr.mxu0 0.0
  %159 = vmatpush1.xpose.msra.mxu0 %v103
  %160 = vmatprep.subr.mxu0 0.0
  %161 = vmatpush1.xpose.msra.mxu0 %v100
  %162 = vmatprep.subr.mxu0 0.0
  %163 = vmatpush1.xpose.msra.mxu0 %v97
  %164 = vmatprep.subr.mxu0 0.0
  %165 = vmatpush1.xpose.msra.mxu0 %v94
  %166 = vmatprep.subr.mxu0 0.0
  %167 = vmatpush1.xpose.msra.mxu0 %v91
  %168 = vmatprep.subr.mxu0 0.0
  %169 = vmatpush1.xpose.msra.mxu0 %v88
  %170 = vmatprep.subr.mxu0 0.0
  %171 = vmatpush1.xpose.msra.mxu0 %v85
  %172 = vmatprep.subr.mxu0 0.0
  %173 = vmatpush1.xpose.msra.mxu0 %v82
  %174 = vmatprep.subr.mxu0 0.0
  %175 = vmatpush1.xpose.msra.mxu0 %v79
  %176 = vmatprep.subr.mxu0 0.0
  %177 = vmatpush1.xpose.msra.mxu0 %v76
  %178 = vmatprep.subr.mxu0 0.0
  %179 = vmatpush1.xpose.msra.mxu0 %v73
  %180 = vmatprep.subr.mxu0 0.0
  %181 = vmatpush1.xpose.msra.mxu0 %v70
  %182 = vmatprep.subr.mxu0 0.0
  %183 = vmatpush1.xpose.msra.mxu0 %v67
  %184 = vmatprep.subr.mxu0 0.0
  %185 = vmatpush1.xpose.msra.mxu0 %v64
  %186 = vmatprep.subr.mxu0 0.0
  %187 = vmatpush1.xpose.msra.mxu0 %v61
  %188 = vmatprep.subr.mxu0 0.0
  %189 = vmatpush2.xpose.msra.mxu0 %v154
  %190 = vmatprep.subr.mxu0 0.0
  %191 = vmatpush2.xpose.msra.mxu0 %v151
  %192 = vmatprep.subr.mxu0 0.0
  %193 = vmatpush2.xpose.msra.mxu0 %v148
  %194 = vmatprep.subr.mxu0 0.0
  %195 = vmatpush2.xpose.msra.mxu0 %v145
  %196 = vmatprep.subr.mxu0 0.0
  %197 = vmatpush2.xpose.msra.mxu0 %v142
  %198 = vmatprep.subr.mxu0 0.0
  %199 = vmatpush2.xpose.msra.mxu0 %v139
  %200 = vmatprep.subr.mxu0 0.0
  %201 = vmatpush2.xpose.msra.mxu0 %v136
  %202 = vmatprep.subr.mxu0 0.0
  %203 = vmatpush2.xpose.msra.mxu0 %v133
  %204 = vmatprep.subr.mxu0 0.0
  %205 = vmatpush2.xpose.msra.mxu0 %v130
  %206 = vmatprep.subr.mxu0 0.0
  %207 = vmatpush2.xpose.msra.mxu0 %v127
  %208 = vmatprep.subr.mxu0 0.0
  %209 = vmatpush2.xpose.msra.mxu0 %v124
  %210 = vmatprep.subr.mxu0 0.0
  %211 = vmatpush2.xpose.msra.mxu0 %v121
  %212 = vmatprep.subr.mxu0 0.0
  %213 = vmatpush2.xpose.msra.mxu0 %v118
  %214 = vmatprep.subr.mxu0 0.0
  %215 = vmatpush2.xpose.msra.mxu0 %v115
  %216 = vmatprep.subr.mxu0 0.0
  %217 = vmatpush2.xpose.msra.mxu0 %v112
  %218 = vmatprep.subr.mxu0 0.0
  %219 = vmatpush2.xpose.msra.mxu0 %v109
  %220 = vmatprep.mubr.f32.mxu0 0.0
  %221 = vmatmul.mubr.f32.gmra.mxu0 %v58
  %v222 = vpop.f32.mrf.mxu0
  %v223 = vadd.f32 0.0, %v222
  %v224 = vpop.f32.mrf.mxu0
  %v225 = vadd.f32 0.0, %v224
  %226 = vdwg.mxu0
  %s227 = smul.u32 0, 256
  %v228 = vld [vmem:[%s2] sm:$0xff]
  %v229 = vstv %s227
  %v230 = vsub.s32 %v228, %v229
  %v231 = vlaneseq
  %v232 = vand.u32 %v231, 127
  %v233 = vmax.f32 %v223, %v225
  %v234 = vld [vmem:[#allocation2] sm:$0xff]
  %v235 = vmax.f32 %v234, %v233
  %v236 = vsub.f32 %v234, %v235
  %v237 = vmul.f32 %v236, 1.442695
  %v238 = vpow.pop %v237
  %v239 = vld [vmem:[#allocation3] sm:$0xff]
  %v240 = vmul.f32 %v238, %v239
  %v241 = vld [vmem:[#allocation4] sm:$0xff]
  %v242 = vsub.f32 %v223, %v235
  %v243 = vmul.f32 %v242, 1.442695
  %v244 = vpow.pop %v243
  %v245 = vadd.f32 %v240, %v244
  %246 = vset.pattern.permute.xlu0 0
  %247 = vperm.xlu0 %246, %v230
  %v248 = vpop.permute.xlu0 %247
  %vm249 = vcmp.eq.s32.totalorder %v232, %v248
  %v250 = vsel %vm249, %v223, 0.0
  %v251 = vadd.f32 %v241, %v250
  %v252 = vsub.f32 %v225, %v235
  %v253 = vmul.f32 %v252, 1.442695
  %v254 = vpow.pop %v253
  %v255 = vadd.f32 %v245, %v254
  %v256 = vadd.s32 %v232, 128
  %vm257 = vcmp.eq.s32.totalorder %v256, %v248
  %v258 = vsel %vm257, %v225, 0.0
  %v259 = vadd.f32 %v251, %v258
  %260 = vst [vmem:[#allocation2] sm:$0xff] %v235
  %261 = vst [vmem:[#allocation3] sm:$0xff] %v255
  %262 = vst [vmem:[#allocation4] sm:$0xff] %v259
  // Predicated region
  $region18: #{tpu_custom_call.1} parent=0 // pred_check
    _
  $region19: #{tpu_custom_call.1} parent=0 // pred_check_branch
    %264 = sbr.rel (%p16) target = $region21
  $region20: #{tpu_custom_call.1} parent=0 // pred_region
    %v265 = vld [vmem:[#allocation2] sm:$0xff]
    %266 = vmax.xlane.f32.xlu0 %v265
    %v267 = vpop.xlane.xlu0 %266
    %v268 = vld [vmem:[#allocation3] sm:$0xff]
    %v269 = vsub.f32 %v265, %v267
    %v270 = vmul.f32 %v269, 1.442695
    %v271 = vpow.pop %v270
    %v272 = vmul.f32 %v268, %v271
    %273 = vadd.xlane.f32.xlu0 %v272
    %v274 = vpop.xlane.xlu0 %273
    %v275 = vld [vmem:[#allocation4] sm:$0xff]
    %276 = vadd.xlane.f32.xlu0 %v275
    %v277 = vpop.xlane.xlu0 %276
    %v278 = vlog2.pop %v274
    %v279 = vmul.f32 %v278, 0.6931472
    %v280 = vadd.f32 %v267, %v279
    %v281 = vsub.f32 %v280, %v277
    %v282 = vld [vmem:[%s2] sm:$0xff]
    %vm283 = vcmp.eq.s32.totalorder %v282, 4294967196
    %v284 = vsel %vm283, 0.0, %v281
    %vm285 = vcmask 7168
    %286 = vst.msk [vmem:[%s3] sm:$0xff] %vm285, %v284
  $region21: #{tpu_custom_call.1} parent=0 // pred_fallthru
    _
  // Predicated region
  $region22: #{tpu_custom_call.1} parent=0 // pred_check
    _
  $region23: #{tpu_custom_call.1} parent=0 // pred_check_branch
    %288 = sbr.rel (0) target = $region25
  $region24: #{tpu_custom_call.1} parent=0 // pred_region
    _
  $region25: #{tpu_custom_call.1} parent=0 // pred_fallthru
    _
  // Predicated region
  $region26: #{tpu_custom_call.1} parent=0 // pred_check
    _
  $region27: #{tpu_custom_call.1} parent=0 // pred_check_branch
    %290 = sbr.rel (0) target = $region29
  $region28: #{tpu_custom_call.1} parent=0 // pred_region
    _
  $region29: #{tpu_custom_call.1} parent=0 // pred_fallthru
    _

</llo_original>
